<compile_context>
chip_gen: v5e
topology: v5e:2x2
jax: 0.10.0
libtpu: 0.0.40
codegen_flags: <defaults>
</compile_context>

<pallas_src>
import functools

import jax
import jax.numpy as jnp
from jax.experimental import pallas as pl
from jax.experimental.pallas import tpu as pltpu


NODE_TILE = 512  # rows of Z streamed per grid step (multiple of 128)


def _round_up(x, m):
    return ((x + m - 1) // m) * m


def _segments(n_node, K):
    """Replicate the PyTorch chunking loop exactly (static / host side)."""
    step = n_node // K
    assert step >= 1, "n_node must be >= K"
    starts, lengths = [], []
    i = 0
    while i < n_node:
        if n_node - i < 2 * step:
            starts.append(i)
            lengths.append(n_node - i)
            break
        starts.append(i)
        lengths.append(step)
        i += step
    return starts, lengths


def _readout_kernel(w_ref, inv_ref, z_ref, out_ref, acc_ref):
    # Grid axis 0 streams tiles of the node (contraction) axis.
    k = pl.program_id(0)

    @pl.when(k == 0)
    def _():
        acc_ref[...] = jnp.zeros_like(acc_ref)

    # (S_pad, tk) @ (tk, d) -> (S_pad, d), accumulated in f32 on the MXU.
    acc_ref[...] += jnp.dot(w_ref[...], z_ref[...],
                            preferred_element_type=jnp.float32)

    @pl.when(k == pl.num_programs(0) - 1)
    def _():
        # Scale segment sums by 1/len (f32) and cast once at the final store.
        out_ref[...] = (acc_ref[...] * inv_ref[...]).astype(out_ref.dtype)


@functools.partial(jax.jit, static_argnames=("K",))
def readout(Z, K):
    """Pallas implementation of Readout(K).forward(Z)."""
    n_node, d = Z.shape
    starts, lengths = _segments(n_node, K)
    num_seg = len(starts)

    # Pad segment count to a sublane multiple and the node axis to the tile.
    S_pad = max(8, _round_up(num_seg, 8))
    if n_node <= NODE_TILE:
        n_pad = _round_up(n_node, 8)
        tk = n_pad
    else:
        n_pad = _round_up(n_node, NODE_TILE)
        tk = NODE_TILE

    # Zero-pad Z on the node axis; padded rows are multiplied by zero in W.
    Z_p = Z
    if n_pad != n_node:
        Z_p = jnp.pad(Z, ((0, n_pad - n_node), (0, 0)))

    starts_a = jnp.asarray(starts, dtype=jnp.int32)
    lengths_a = jnp.asarray(lengths, dtype=jnp.int32)

    # Indicator matrix W[s, r] = 1 iff row r belongs to segment s.
    starts_p = jnp.full((S_pad,), -1, dtype=jnp.int32).at[:num_seg].set(starts_a)
    ends_p = jnp.full((S_pad,), -1, dtype=jnp.int32).at[:num_seg].set(
        starts_a + lengths_a)
    cols = jnp.arange(n_pad, dtype=jnp.int32)[None, :]
    W = ((cols >= starts_p[:, None]) & (cols < ends_p[:, None])).astype(Z.dtype)

    # Per-segment 1/len in float32 (zeros for padded segment rows).
    inv_len = jnp.zeros((S_pad, 1), jnp.float32).at[:num_seg, 0].set(
        1.0 / lengths_a.astype(jnp.float32))

    grid = (n_pad // tk,)

    seg_means = pl.pallas_call(
        _readout_kernel,
        out_shape=jax.ShapeDtypeStruct((S_pad, d), Z.dtype),
        grid_spec=pltpu.PrefetchScalarGridSpec(
            num_scalar_prefetch=0,
            grid=grid,
            in_specs=[
                pl.BlockSpec((S_pad, tk), lambda k: (0, k)),   # W tile
                pl.BlockSpec((S_pad, 1), lambda k: (0, 0)),    # 1/len
                pl.BlockSpec((tk, d), lambda k: (k, 0)),       # Z tile (streamed)
            ],
            out_specs=pl.BlockSpec((S_pad, d), lambda k: (0, 0)),
            scratch_shapes=[pltpu.VMEM((S_pad, d), jnp.float32)],
        ),
        compiler_params=pltpu.CompilerParams(
            dimension_semantics=("arbitrary",)),
    )(W, inv_len, Z_p)

    return seg_means[:num_seg, :].reshape(1, num_seg * d)


def _readout_ref(Z, K):
    """Pure-JAX reference matching the PyTorch module."""
    n_node = Z.shape[0]
    step = n_node // K
    chunks = []
    i = 0
    while i < n_node:
        if n_node - i < 2 * step:
            chunks.append(jnp.mean(Z[i:n_node], axis=0))
            break
        chunks.append(jnp.mean(Z[i:i + step], axis=0))
        i += step
    return jnp.concatenate(chunks, axis=0).reshape(1, -1)


if __name__ == "__main__":
    key = jax.random.PRNGKey(0)

    # Case 1: evenly divisible segments (matches the module's typical use).
    n_node, d, K = 16, 128, 4
    Z = jax.random.normal(key, (n_node, d), dtype=jnp.float32)
    out = jax.block_until_ready(readout(Z, K))
    ref = _readout_ref(Z, K)
    assert out.shape == ref.shape, (out.shape, ref.shape)
    assert jnp.allclose(out, ref, atol=1e-5, rtol=1e-5)

    # Case 2: remainder absorbed by the final chunk (uneven last segment).
    n_node2, K2 = 19, 4
    Z2 = jax.random.normal(jax.random.PRNGKey(1), (n_node2, d), jnp.float32)
    out2 = jax.block_until_ready(readout(Z2, K2))
    ref2 = _readout_ref(Z2, K2)
    assert out2.shape == ref2.shape, (out2.shape, ref2.shape)
    assert jnp.allclose(out2, ref2, atol=1e-5, rtol=1e-5)

    # Case 3: node axis larger than one tile (exercises the accumulator path).
    n_node3, K3 = 1050, 7
    Z3 = jax.random.normal(jax.random.PRNGKey(2), (n_node3, d), jnp.float32)
    out3 = jax.block_until_ready(readout(Z3, K3))
    ref3 = _readout_ref(Z3, K3)
    assert out3.shape == ref3.shape, (out3.shape, ref3.shape)
    assert jnp.allclose(out3, ref3, atol=1e-4, rtol=1e-4)

    print("KERNEL_OK")
</pallas_src>

<mosaic_0001>
module attributes {stable_mosaic.version = 11 : i64} {
  func.func @_readout_kernel(%arg0: i32, %arg1: memref<8x16xf32, #tpu.memory_space<vmem>>, %arg2: memref<8x1xf32, #tpu.memory_space<vmem>>, %arg3: memref<16x128xf32, #tpu.memory_space<vmem>>, %arg4: memref<8x128xf32, #tpu.memory_space<vmem>>, %arg5: memref<8x128xf32, #tpu.memory_space<vmem>>) attributes {dimension_semantics = [#tpu.dimension_semantics<arbitrary>], iteration_bounds = array<i64: 1>, scalar_prefetch = 0 : i64, scratch_operands = 1 : i64, tpu.core_type = #tpu.core_type<tc>, window_params = [{transform_indices = @transform_0, window_bounds = array<i64: 8, 16>}, {pipeline_mode = #tpu.pipeline_mode<synchronous>, transform_indices = @transform_1, window_bounds = array<i64: 8, 1>}, {transform_indices = @transform_2, window_bounds = array<i64: 16, 128>}, {pipeline_mode = #tpu.pipeline_mode<synchronous>, transform_indices = @transform_3, window_bounds = array<i64: 8, 128>}]} {
    %c0_i32 = arith.constant 0 : i32
    %0 = arith.cmpi eq, %arg0, %c0_i32 : i32
    %1 = arith.extui %0 : i1 to i32
    %c0_i32_0 = arith.constant 0 : i32
    %2 = arith.cmpi ne, %1, %c0_i32_0 : i32
    scf.if %2 {
      %cst_10 = arith.constant 0.000000e+00 : f32
      %12 = vector.broadcast %cst_10 : f32 to vector<8x128xf32>
      %c0_11 = arith.constant 0 : index
      %c0_12 = arith.constant 0 : index
      %13 = vector.load %arg5[%c0_11, %c0_12] : memref<8x128xf32, #tpu.memory_space<vmem>>, vector<8x128xf32>
      tpu.vector_store %arg5[%c0_11, %c0_12], %12 {strides = array<i32>} : memref<8x128xf32, #tpu.memory_space<vmem>>, vector<8x128xf32>,
    } else {
    }
    %c0 = arith.constant 0 : index
    %c0_1 = arith.constant 0 : index
    %3 = vector.load %arg5[%c0, %c0_1] : memref<8x128xf32, #tpu.memory_space<vmem>>, vector<8x128xf32>
    %c0_2 = arith.constant 0 : index
    %c0_3 = arith.constant 0 : index
    %4 = vector.load %arg1[%c0_2, %c0_3] : memref<8x16xf32, #tpu.memory_space<vmem>>, vector<8x16xf32>
    %c0_4 = arith.constant 0 : index
    %c0_5 = arith.constant 0 : index
    %5 = vector.load %arg3[%c0_4, %c0_5] : memref<16x128xf32, #tpu.memory_space<vmem>>, vector<16x128xf32>
    %cst = arith.constant dense<0.000000e+00> : vector<8x128xf32>
    %6 = tpu.matmul %4, %5, %cst {dimension_numbers = #tpu.dot_dimension_numbers<[1], [0], [0], [1], [0, 0, 1, 1], [], []>} : vector<8x16xf32>, vector<16x128xf32>, vector<8x128xf32> -> vector<8x128xf32>
    %7 = arith.addf %3, %6 : vector<8x128xf32>
    %c0_6 = arith.constant 0 : index
    %c0_7 = arith.constant 0 : index
    %8 = vector.load %arg5[%c0_6, %c0_7] : memref<8x128xf32, #tpu.memory_space<vmem>>, vector<8x128xf32>
    tpu.vector_store %arg5[%c0_6, %c0_7], %7 {strides = array<i32>} : memref<8x128xf32, #tpu.memory_space<vmem>>, vector<8x128xf32>,
    %c0_i32_8 = arith.constant 0 : i32
    %9 = arith.cmpi eq, %arg0, %c0_i32_8 : i32
    %10 = arith.extui %9 : i1 to i32
    %c0_i32_9 = arith.constant 0 : i32
    %11 = arith.cmpi ne, %10, %c0_i32_9 : i32
    scf.if %11 {
      %c0_10 = arith.constant 0 : index
      %c0_11 = arith.constant 0 : index
      %12 = vector.load %arg5[%c0_10, %c0_11] : memref<8x128xf32, #tpu.memory_space<vmem>>, vector<8x128xf32>
      %c0_12 = arith.constant 0 : index
      %c0_13 = arith.constant 0 : index
      %13 = vector.load %arg2[%c0_12, %c0_13] : memref<8x1xf32, #tpu.memory_space<vmem>>, vector<8x1xf32>
      %14 = vector.broadcast %13 : vector<8x1xf32> to vector<8x128xf32>
      %15 = arith.mulf %12, %14 : vector<8x128xf32>
      %c0_14 = arith.constant 0 : index
      %c0_15 = arith.constant 0 : index
      %16 = vector.load %arg4[%c0_14, %c0_15] : memref<8x128xf32, #tpu.memory_space<vmem>>, vector<8x128xf32>
      tpu.vector_store %arg4[%c0_14, %c0_15], %15 {strides = array<i32>} : memref<8x128xf32, #tpu.memory_space<vmem>>, vector<8x128xf32>,
    } else {
    }
    return
  }
  func.func @transform_0(%arg0: i32) -> (i32, i32) {
    %c0_i32 = arith.constant 0 : i32
    %c0_i32_0 = arith.constant 0 : i32
    return %c0_i32, %arg0 : i32, i32
  }
  func.func @transform_1(%arg0: i32) -> (i32, i32) {
    %c0_i32 = arith.constant 0 : i32
    %c0_i32_0 = arith.constant 0 : i32
    %c0_i32_1 = arith.constant 0 : i32
    return %c0_i32, %c0_i32_0 : i32, i32
  }
  func.func @transform_2(%arg0: i32) -> (i32, i32) {
    %c0_i32 = arith.constant 0 : i32
    %c0_i32_0 = arith.constant 0 : i32
    return %arg0, %c0_i32 : i32, i32
  }
  func.func @transform_3(%arg0: i32) -> (i32, i32) {
    %c0_i32 = arith.constant 0 : i32
    %c0_i32_0 = arith.constant 0 : i32
    %c0_i32_1 = arith.constant 0 : i32
    return %c0_i32, %c0_i32_0 : i32, i32
  }
}

</mosaic_0001>

<llo_original>
// kernel: readout.1
$region0: #{readout.1}
  #allocation0 [shape = 'u32[]', space=smem, size = 0x4, offset = 0x4, fixed_abs, tag = 'smem constant byte address 0x4 - core index']
  #allocation1 [shape = 'u32[72,128]{1,0:T(1,128)}', space=vmem, size = 0x9000, scoped, tag = 'internal scratch']
  #allocation2 [shape = 'f32[8,128]{1,0:T(8,128)}', space=vmem, size = 0x1000, scoped, tag = 'scratch operand']
  %s0 = inlined_call_operand.vmem [shape: f32[8,16], index: 0, kind: input, shape index: {}]
  %s1 = inlined_call_operand.vmem [shape: f32[8,1], index: 1, kind: input, shape index: {}]
  %s2 = inlined_call_operand.vmem [shape: f32[16,128], index: 2, kind: input, shape index: {}]
  %s3 = inlined_call_operand.vmem [shape: f32[8,128], index: 3, kind: output, shape index: {}]
  %s4 = sld [smem:[#allocation0]]
  $region30: #{readout.1} parent=0
    _
  %s6 = ssub.s32 1, %s4
  %s7 = scalar_select 0, %s6, %s4
  // Predicated region
  $region2: #{readout.1} parent=0 // pred_check
    _
  $region3: #{readout.1} parent=0 // pred_check_branch
    %9 = sbr.rel (0) target = $region5
  $region4: #{readout.1} parent=0 // pred_region
    _
  $region5: #{readout.1} parent=0 // pred_fallthru
    _
  // Predicated region
  $region6: #{readout.1} parent=0 // pred_check
    _
  $region7: #{readout.1} parent=0 // pred_check_branch
    %11 = sbr.rel (0) target = $region9
  $region8: #{readout.1} parent=0 // pred_region
    _
  $region9: #{readout.1} parent=0 // pred_fallthru
    _
  // Predicated region
  $region10: #{readout.1} parent=0 // pred_check
    _
  $region11: #{readout.1} parent=0 // pred_check_branch
    %13 = sbr.rel (0) target = $region13
  $region12: #{readout.1} parent=0 // pred_region
    _
  $region13: #{readout.1} parent=0 // pred_fallthru
    _
  %p14 = scmp.eq.s32.totalorder 0, 0
  // Predicated region
  $region14: #{readout.1} parent=0 // pred_check
    %p15 = pneg %p14
  $region15: #{readout.1} parent=0 // pred_check_branch
    %17 = sbr.rel (%p15) target = $region17
  $region16: #{readout.1} parent=0 // pred_region
    %18 = vst [vmem:[#allocation2] sm:$0xff] 0.0
  $region17: #{readout.1} parent=0 // pred_fallthru
    _
  %v19 = vld [vmem:[#allocation2] sm:$0xff]
  %v20 = vld [vmem:[%s0] sm:$0xff]
  %v21 = vld [vmem:[%s2] sm:$0xff]
  %v22 = vld [vmem:[%s2 + $0x8] sm:$0xff]
  %vm23 = vcmask 130048
  %v25 = vsel %vm23, %v20, 0
  %27 = vmatpush.msra.mxu0 0.0
  %28 = vmatpush.msra.mxu0 0.0
  %29 = vmatpush.msra.mxu0 0.0
  %30 = vmatpush.msra.mxu0 0.0
  %31 = vmatpush.msra.mxu0 0.0
  %32 = vmatpush.msra.mxu0 0.0
  %33 = vmatpush.msra.mxu0 0.0
  %34 = vmatpush.msra.mxu0 0.0
  %35 = vmatpush.msra.mxu0 0.0
  %36 = vmatpush.msra.mxu0 0.0
  %37 = vmatpush.msra.mxu0 0.0
  %38 = vmatpush.msra.mxu0 0.0
  %39 = vmatpush.msra.mxu0 0.0
  %40 = vmatpush.msra.mxu0 0.0
  %41 = vmatpush.msra.mxu0 %v22
  %42 = vmatpush.msra.mxu0 %v21
  %43 = vmatmul.f32.gmra.mxu0 %v25
  %v44 = vpop.f32.mrf.mxu0
  %v45 = vadd.f32 0.0, %v44
  %46 = vdwg.mxu0
  %v47 = vadd.f32 %v19, %v45
  %48 = vst [vmem:[#allocation2] sm:$0xff] %v47
  // Predicated region
  $region18: #{readout.1} parent=0 // pred_check
    %p49 = pneg %p14
  $region19: #{readout.1} parent=0 // pred_check_branch
    %51 = sbr.rel (%p49) target = $region21
  $region20: #{readout.1} parent=0 // pred_region
    %v52 = vld [vmem:[#allocation2] sm:$0xff]
    %v53 = vld [vmem:[%s1] sm:$0xff]
    %55 = vset.pattern.permute.xlu0 0
    %56 = vperm.xlu0 %55, %v53
    %v57 = vpop.permute.xlu0 %56
    %v59 = vmul.f32 %v52, %v57
    %60 = vst [vmem:[%s3] sm:$0xff] %v59
  $region21: #{readout.1} parent=0 // pred_fallthru
    _
  // Predicated region
  $region22: #{readout.1} parent=0 // pred_check
    _
  $region23: #{readout.1} parent=0 // pred_check_branch
    %62 = sbr.rel (0) target = $region25
  $region24: #{readout.1} parent=0 // pred_region
    _
  $region25: #{readout.1} parent=0 // pred_fallthru
    _
  // Predicated region
  $region26: #{readout.1} parent=0 // pred_check
    _
  $region27: #{readout.1} parent=0 // pred_check_branch
    %64 = sbr.rel (0) target = $region29
  $region28: #{readout.1} parent=0 // pred_region
    _
  $region29: #{readout.1} parent=0 // pred_fallthru
    _

</llo_original>
